<compile_context>
chip_gen: v6e
topology: v6e:2x2x1
jax: 0.10.0
libtpu: 0.0.40
codegen_flags: <defaults>
</compile_context>

<pallas_src>
import jax
import jax.numpy as jnp
from jax.experimental import pallas as pl
from jax.experimental.pallas import tpu as pltpu


def _round_up(x, m):
    return (x + m - 1) // m * m


# ---------------------------------------------------------------------------
# Fused kernel: im2col-conv matmul + bias + ReLU + batched global-avg-pool
#               + batched Linear head.  Single grid step for the whole batch.
# ---------------------------------------------------------------------------
def _fused_kernel(x_ref, wc_ref, bc_ref, pool_ref, wf_ref, bf_ref,
                  rep_ref, logit_ref):
    # x_ref    : (BM, K)  bf16  im2col slab, BM = B*H*W, K = 9*Cin
    # wc_ref   : (K, Cp)  bf16  conv weight as one matmul operand
    # bc_ref   : (1, Cp)  f32   conv bias (lane padded)
    # pool_ref : (B, BM)  bf16  block-diagonal 1/(H*W) pooling matrix
    # wf_ref   : (Cp, Np) bf16  head weight (padded)
    # bf_ref   : (1, Np)  f32   head bias (padded)
    # rep_ref  : (B, Cp)  f32   pooled representation (output)
    # logit_ref: (B, Np)  f32   logits (output)

    # 3x3 conv as ONE MXU matmul; f32 accumulation happens inside the MXU.
    y = jnp.dot(x_ref[...], wc_ref[...],
                preferred_element_type=jnp.float32)              # (BM, Cp) f32
    y = jnp.maximum(y + bc_ref[...], 0.0)                        # bias + ReLU (VPU)

    # Global average pool for the whole batch as one matmul against the
    # block-diagonal pooling matrix (rows of image b contribute to output row b).
    pooled = jnp.dot(pool_ref[...], y.astype(jnp.bfloat16),
                     preferred_element_type=jnp.float32)         # (B, Cp) f32
    rep_ref[...] = pooled

    # Linear head on the pooled representation, batched over B.
    logit_ref[...] = (jnp.dot(pooled.astype(jnp.bfloat16), wf_ref[...],
                              preferred_element_type=jnp.float32)
                      + bf_ref[...])


# ---------------------------------------------------------------------------
# Wrapper: layout glue (cheap, ~1x data) + pallas_call.
# ---------------------------------------------------------------------------
def net_wrapper_forward(x_nchw, params):
    """Returns (logit, representation) exactly like NetWrapper.forward."""
    w_conv, b_conv, w_fc, b_fc = params
    B, Cin, H, W = x_nchw.shape
    Cmid = w_conv.shape[0]
    ncls = w_fc.shape[1]

    M = H * W                       # valid output rows per image
    BM = B * M                      # rows for the whole batch
    K = 9 * Cin                     # im2col contraction depth
    Cp = _round_up(Cmid, 128)       # lane-dense channel dim
    Np = _round_up(ncls, 128)       # lane-dense class dim

    # im2col slab with only the M valid rows per image; K ordered (Cin, tap)
    # to match w_conv.reshape(Cmid, Cin*9).  Cast to bf16 before the DMA.
    xp = jnp.pad(x_nchw, ((0, 0), (0, 0), (1, 1), (1, 1)))       # (B,Cin,H+2,W+2)
    patches = [xp[:, :, dh:dh + H, dw:dw + W]
               for dh in range(3) for dw in range(3)]            # 9 x (B,Cin,H,W)
    cols = jnp.stack(patches, axis=2)                            # (B,Cin,9,H,W)
    cols = jnp.transpose(cols, (0, 3, 4, 1, 2)).reshape(BM, K)
    cols = cols.astype(jnp.bfloat16)

    # Conv weight (Cout,Cin,kh,kw) -> (K, Cp) bf16.
    wc = jnp.pad(w_conv.reshape(Cmid, K).T,
                 ((0, 0), (0, Cp - Cmid))).astype(jnp.bfloat16)
    bc = jnp.pad(b_conv, (0, Cp - Cmid)).reshape(1, Cp).astype(jnp.float32)

    # Block-diagonal pooling matrix: pool[b, m] = 1/(H*W) iff row m is image b.
    # (1/256 is exactly representable in bf16.)
    row_img = jnp.arange(BM, dtype=jnp.int32) // M
    pool = (row_img[None, :] == jnp.arange(B, dtype=jnp.int32)[:, None])
    pool = (pool.astype(jnp.float32) / float(M)).astype(jnp.bfloat16)   # (B, BM)

    # Head weights (padded, bf16) and bias (f32).
    wf = jnp.pad(w_fc, ((0, Cp - Cmid), (0, Np - ncls))).astype(jnp.bfloat16)
    bf = jnp.pad(b_fc, (0, Np - ncls)).reshape(1, Np).astype(jnp.float32)

    flops = 2 * BM * K * Cp + 2 * B * BM * Cp + 2 * B * Cp * Np
    bytes_accessed = ((cols.size + wc.size + pool.size + wf.size) * 2
                      + (bc.size + bf.size) * 4
                      + (B * Cp + B * Np) * 4)

    rep_p, logit_p = pl.pallas_call(
        _fused_kernel,
        out_shape=(
            jax.ShapeDtypeStruct((B, Cp), jnp.float32),
            jax.ShapeDtypeStruct((B, Np), jnp.float32),
        ),
        grid_spec=pltpu.PrefetchScalarGridSpec(
            num_scalar_prefetch=0,
            grid=(1,),
            in_specs=[
                pl.BlockSpec((BM, K), lambda i: (0, 0)),
                pl.BlockSpec((K, Cp), lambda i: (0, 0)),
                pl.BlockSpec((1, Cp), lambda i: (0, 0)),
                pl.BlockSpec((B, BM), lambda i: (0, 0)),
                pl.BlockSpec((Cp, Np), lambda i: (0, 0)),
                pl.BlockSpec((1, Np), lambda i: (0, 0)),
            ],
            out_specs=[
                pl.BlockSpec((B, Cp), lambda i: (0, 0)),
                pl.BlockSpec((B, Np), lambda i: (0, 0)),
            ],
        ),
        compiler_params=pltpu.CompilerParams(
            dimension_semantics=("arbitrary",),
            vmem_limit_bytes=4 * 1024 * 1024,   # working set is well under 1 MiB
        ),
        cost_estimate=pl.CostEstimate(
            flops=flops, transcendentals=0, bytes_accessed=bytes_accessed),
    )(cols, wc, bc, pool, wf, bf)

    logit = logit_p[:, :ncls]
    rep = rep_p[:, :Cmid]
    return logit, rep


# ---------------------------------------------------------------------------
# Pure-JAX reference (f32 end-to-end).
# ---------------------------------------------------------------------------
def _ref_forward(x_nchw, params):
    w_conv, b_conv, w_fc, b_fc = params
    B, Cin, H, W = x_nchw.shape
    Cmid = w_conv.shape[0]
    xp = jnp.pad(x_nchw, ((0, 0), (0, 0), (1, 1), (1, 1)))
    patches = [xp[:, :, dh:dh + H, dw:dw + W] for dh in range(3) for dw in range(3)]
    cols = jnp.stack(patches, axis=0).reshape(3, 3, B, Cin, H, W)
    cols = cols.transpose(2, 4, 5, 3, 0, 1).reshape(B * H * W, Cin * 9)
    y = jnp.maximum(cols @ w_conv.reshape(Cmid, Cin * 9).T + b_conv, 0.0)
    rep = y.reshape(B, H * W, Cmid).mean(axis=1)
    logit = rep @ w_fc + b_fc
    return logit, rep


if __name__ == "__main__":
    # Small shapes consistent with the module's forward.
    B, Cin, H, W = 2, 4, 16, 16
    Cmid, num_classes = 8, 10

    key = jax.random.PRNGKey(0)
    kx, kw1, kb1, kw2, kb2 = jax.random.split(key, 5)

    x = jax.random.normal(kx, (B, Cin, H, W), dtype=jnp.float32)

    # Deterministic synthetic parameters (PyTorch conv weight layout: (Cout, Cin, kh, kw)).
    w_conv = 0.1 * jax.random.normal(kw1, (Cmid, Cin, 3, 3), dtype=jnp.float32)
    b_conv = 0.1 * jax.random.normal(kb1, (Cmid,), dtype=jnp.float32)
    w_fc = 0.1 * jax.random.normal(kw2, (Cmid, num_classes), dtype=jnp.float32)
    b_fc = 0.1 * jax.random.normal(kb2, (num_classes,), dtype=jnp.float32)
    params = (w_conv, b_conv, w_fc, b_fc)

    logit, rep = jax.block_until_ready(net_wrapper_forward(x, params))

    assert logit.shape == (B, num_classes)
    assert rep.shape == (B, Cmid)

    # Correctness check vs pure-JAX reference (loose tolerance: bf16 MXU operands).
    logit_ref, rep_ref = jax.block_until_ready(_ref_forward(x, params))
    assert jnp.allclose(rep, rep_ref, rtol=5e-2, atol=1e-2)
    assert jnp.allclose(logit, logit_ref, rtol=5e-2, atol=1e-2)

    print("KERNEL_OK")
</pallas_src>

<mosaic_0001>
module attributes {stable_mosaic.version = 11 : i64} {
  func.func @_fused_kernel(%arg0: i32, %arg1: memref<512x36xbf16, #tpu.memory_space<vmem>>, %arg2: memref<36x128xbf16, #tpu.memory_space<vmem>>, %arg3: memref<1x128xf32, #tpu.memory_space<vmem>>, %arg4: memref<2x512xbf16, #tpu.memory_space<vmem>>, %arg5: memref<128x128xbf16, #tpu.memory_space<vmem>>, %arg6: memref<1x128xf32, #tpu.memory_space<vmem>>, %arg7: memref<2x128xf32, #tpu.memory_space<vmem>>, %arg8: memref<2x128xf32, #tpu.memory_space<vmem>>) attributes {dimension_semantics = [#tpu.dimension_semantics<arbitrary>], iteration_bounds = array<i64: 1>, scalar_prefetch = 0 : i64, scratch_operands = 0 : i64, tpu.core_type = #tpu.core_type<tc>, window_params = [{pipeline_mode = #tpu.pipeline_mode<synchronous>, transform_indices = @transform_0, window_bounds = array<i64: 512, 36>}, {pipeline_mode = #tpu.pipeline_mode<synchronous>, transform_indices = @transform_1, window_bounds = array<i64: 36, 128>}, {pipeline_mode = #tpu.pipeline_mode<synchronous>, transform_indices = @transform_2, window_bounds = array<i64: 1, 128>}, {pipeline_mode = #tpu.pipeline_mode<synchronous>, transform_indices = @transform_3, window_bounds = array<i64: 2, 512>}, {pipeline_mode = #tpu.pipeline_mode<synchronous>, transform_indices = @transform_4, window_bounds = array<i64: 128, 128>}, {pipeline_mode = #tpu.pipeline_mode<synchronous>, transform_indices = @transform_5, window_bounds = array<i64: 1, 128>}, {pipeline_mode = #tpu.pipeline_mode<synchronous>, transform_indices = @transform_6, window_bounds = array<i64: 2, 128>}, {pipeline_mode = #tpu.pipeline_mode<synchronous>, transform_indices = @transform_7, window_bounds = array<i64: 2, 128>}]} {
    %c0 = arith.constant 0 : index
    %c0_0 = arith.constant 0 : index
    %0 = vector.load %arg1[%c0, %c0_0] : memref<512x36xbf16, #tpu.memory_space<vmem>>, vector<512x36xbf16>
    %c0_1 = arith.constant 0 : index
    %c0_2 = arith.constant 0 : index
    %1 = vector.load %arg2[%c0_1, %c0_2] : memref<36x128xbf16, #tpu.memory_space<vmem>>, vector<36x128xbf16>
    %cst = arith.constant dense<0.000000e+00> : vector<512x128xf32>
    %2 = tpu.matmul %0, %1, %cst {dimension_numbers = #tpu.dot_dimension_numbers<[1], [0], [0], [1], [0, 0, 1, 1], [], []>} : vector<512x36xbf16>, vector<36x128xbf16>, vector<512x128xf32> -> vector<512x128xf32>
    %c0_3 = arith.constant 0 : index
    %c0_4 = arith.constant 0 : index
    %3 = vector.load %arg3[%c0_3, %c0_4] : memref<1x128xf32, #tpu.memory_space<vmem>>, vector<1x128xf32>
    %4 = vector.broadcast %3 : vector<1x128xf32> to vector<512x128xf32>
    %5 = arith.addf %2, %4 : vector<512x128xf32>
    %cst_5 = arith.constant 0.000000e+00 : f32
    %6 = vector.broadcast %cst_5 : f32 to vector<512x128xf32>
    %7 = arith.maximumf %5, %6 : vector<512x128xf32>
    %c0_6 = arith.constant 0 : index
    %c0_7 = arith.constant 0 : index
    %8 = vector.load %arg4[%c0_6, %c0_7] : memref<2x512xbf16, #tpu.memory_space<vmem>>, vector<2x512xbf16>
    %9 = arith.truncf %7 : vector<512x128xf32> to vector<512x128xbf16>
    %cst_8 = arith.constant dense<0.000000e+00> : vector<2x128xf32>
    %10 = tpu.matmul %8, %9, %cst_8 {dimension_numbers = #tpu.dot_dimension_numbers<[1], [0], [0], [1], [0, 0, 1, 1], [], []>} : vector<2x512xbf16>, vector<512x128xbf16>, vector<2x128xf32> -> vector<2x128xf32>
    %c0_9 = arith.constant 0 : index
    %c0_10 = arith.constant 0 : index
    %11 = vector.load %arg7[%c0_9, %c0_10] : memref<2x128xf32, #tpu.memory_space<vmem>>, vector<2x128xf32>
    tpu.vector_store %arg7[%c0_9, %c0_10], %10 {strides = array<i32>} : memref<2x128xf32, #tpu.memory_space<vmem>>, vector<2x128xf32>,
    %12 = arith.truncf %10 : vector<2x128xf32> to vector<2x128xbf16>
    %c0_11 = arith.constant 0 : index
    %c0_12 = arith.constant 0 : index
    %13 = vector.load %arg5[%c0_11, %c0_12] : memref<128x128xbf16, #tpu.memory_space<vmem>>, vector<128x128xbf16>
    %cst_13 = arith.constant dense<0.000000e+00> : vector<2x128xf32>
    %14 = tpu.matmul %12, %13, %cst_13 {dimension_numbers = #tpu.dot_dimension_numbers<[1], [0], [0], [1], [0, 0, 1, 1], [], []>} : vector<2x128xbf16>, vector<128x128xbf16>, vector<2x128xf32> -> vector<2x128xf32>
    %c0_14 = arith.constant 0 : index
    %c0_15 = arith.constant 0 : index
    %15 = vector.load %arg6[%c0_14, %c0_15] : memref<1x128xf32, #tpu.memory_space<vmem>>, vector<1x128xf32>
    %16 = vector.broadcast %15 : vector<1x128xf32> to vector<2x128xf32>
    %17 = arith.addf %14, %16 : vector<2x128xf32>
    %c0_16 = arith.constant 0 : index
    %c0_17 = arith.constant 0 : index
    %18 = vector.load %arg8[%c0_16, %c0_17] : memref<2x128xf32, #tpu.memory_space<vmem>>, vector<2x128xf32>
    tpu.vector_store %arg8[%c0_16, %c0_17], %17 {strides = array<i32>} : memref<2x128xf32, #tpu.memory_space<vmem>>, vector<2x128xf32>,
    return
  }
  func.func @transform_0(%arg0: i32) -> (i32, i32) {
    %c0_i32 = arith.constant 0 : i32
    %c0_i32_0 = arith.constant 0 : i32
    %c0_i32_1 = arith.constant 0 : i32
    return %c0_i32, %c0_i32_0 : i32, i32
  }
  func.func @transform_1(%arg0: i32) -> (i32, i32) {
    %c0_i32 = arith.constant 0 : i32
    %c0_i32_0 = arith.constant 0 : i32
    %c0_i32_1 = arith.constant 0 : i32
    return %c0_i32, %c0_i32_0 : i32, i32
  }
  func.func @transform_2(%arg0: i32) -> (i32, i32) {
    %c0_i32 = arith.constant 0 : i32
    %c0_i32_0 = arith.constant 0 : i32
    %c0_i32_1 = arith.constant 0 : i32
    return %c0_i32, %c0_i32_0 : i32, i32
  }
  func.func @transform_3(%arg0: i32) -> (i32, i32) {
    %c0_i32 = arith.constant 0 : i32
    %c0_i32_0 = arith.constant 0 : i32
    %c0_i32_1 = arith.constant 0 : i32
    return %c0_i32, %c0_i32_0 : i32, i32
  }
  func.func @transform_4(%arg0: i32) -> (i32, i32) {
    %c0_i32 = arith.constant 0 : i32
    %c0_i32_0 = arith.constant 0 : i32
    %c0_i32_1 = arith.constant 0 : i32
    return %c0_i32, %c0_i32_0 : i32, i32
  }
  func.func @transform_5(%arg0: i32) -> (i32, i32) {
    %c0_i32 = arith.constant 0 : i32
    %c0_i32_0 = arith.constant 0 : i32
    %c0_i32_1 = arith.constant 0 : i32
    return %c0_i32, %c0_i32_0 : i32, i32
  }
  func.func @transform_6(%arg0: i32) -> (i32, i32) {
    %c0_i32 = arith.constant 0 : i32
    %c0_i32_0 = arith.constant 0 : i32
    %c0_i32_1 = arith.constant 0 : i32
    return %c0_i32, %c0_i32_0 : i32, i32
  }
  func.func @transform_7(%arg0: i32) -> (i32, i32) {
    %c0_i32 = arith.constant 0 : i32
    %c0_i32_0 = arith.constant 0 : i32
    %c0_i32_1 = arith.constant 0 : i32
    return %c0_i32, %c0_i32_0 : i32, i32
  }
}

</mosaic_0001>

<llo_original>
// kernel: tpu_custom_call.1
$region0: #{tpu_custom_call.1}
  #allocation0 [shape = 'u32[]', space=smem, size = 0x4, offset = 0x4, fixed_abs, tag = 'smem constant byte address 0x4 - core index']
  #allocation1 [shape = 'u32[144,128]{1,0:T(1,128)}', space=vmem, size = 0x12000, scoped, tag = 'internal scratch']
  %s0 = inlined_call_operand.vmem [shape: bf16[512,36], index: 0, kind: input, shape index: {}]
  %s1 = inlined_call_operand.vmem [shape: bf16[36,128], index: 1, kind: input, shape index: {}]
  %s2 = inlined_call_operand.vmem [shape: f32[1,128], index: 2, kind: input, shape index: {}]
  %s3 = inlined_call_operand.vmem [shape: bf16[2,512], index: 3, kind: input, shape index: {}]
  %s4 = inlined_call_operand.vmem [shape: bf16[128,128], index: 4, kind: input, shape index: {}]
  %s5 = inlined_call_operand.vmem [shape: f32[1,128], index: 5, kind: input, shape index: {}]
  %s6 = inlined_call_operand.hbm [shape: f32[2,128], index: 6, kind: output, shape index: {0}]
  %s7 = inlined_call_operand.hbm [shape: f32[2,128], index: 7, kind: output, shape index: {1}]
  %8 = xla_tuple %s6, %s7
  %s9 = sld [smem:[#allocation0]]
  $region42: #{tpu_custom_call.1} parent=0
    _
  %s11 = ssub.s32 1, %s9
  %s12 = scalar_select 0, %s11, %s9
  $region1: #{tpu_custom_call.1} parent=0
    #allocation2 [shape = 'u8[1024]{0}', space=vmem, size = 0x400, scoped, tag = 'output window, operand 0, single buffered']
    #allocation3 [shape = 's32[1]{0}', space=sflag, size = 0x4, scoped, tag = 'scoped memory for tpu_custom_call.1']
    #allocation4 [shape = 'u8[1024]{0}', space=vmem, size = 0x400, scoped, tag = 'output window, operand 1, single buffered']
    #allocation5 [shape = 's32[1]{0}', space=sflag, size = 0x4, scoped, tag = 'scoped memory for tpu_custom_call.1']
    %13 = vsyncpa [#allocation3], 0
    %14 = vsyncpa [#allocation5], 0
    // Predicated region
    $region2: #{tpu_custom_call.1} parent=1 // pred_check
      _
    $region3: #{tpu_custom_call.1} parent=1 // pred_check_branch
      %16 = sbr.rel (0) target = $region5
    $region4: #{tpu_custom_call.1} parent=1 // pred_region
      _
    $region5: #{tpu_custom_call.1} parent=1 // pred_fallthru
      _
    // Predicated region
    $region6: #{tpu_custom_call.1} parent=1 // pred_check
      _
    $region7: #{tpu_custom_call.1} parent=1 // pred_check_branch
      %18 = sbr.rel (0) target = $region9
    $region8: #{tpu_custom_call.1} parent=1 // pred_region
      _
    $region9: #{tpu_custom_call.1} parent=1 // pred_fallthru
      _
    // Predicated region
    $region10: #{tpu_custom_call.1} parent=1 // pred_check
      _
    $region11: #{tpu_custom_call.1} parent=1 // pred_check_branch
      %20 = sbr.rel (0) target = $region13
    $region12: #{tpu_custom_call.1} parent=1 // pred_region
      _
    $region13: #{tpu_custom_call.1} parent=1 // pred_fallthru
      _
    // Predicated region
    $region14: #{tpu_custom_call.1} parent=1 // pred_check
      _
    $region15: #{tpu_custom_call.1} parent=1 // pred_check_branch
      %22 = sbr.rel (0) target = $region17
    $region16: #{tpu_custom_call.1} parent=1 // pred_region
      _
    $region17: #{tpu_custom_call.1} parent=1 // pred_fallthru
      _
    // Predicated region
    $region18: #{tpu_custom_call.1} parent=1 // pred_check
      _
    $region19: #{tpu_custom_call.1} parent=1 // pred_check_branch
      %24 = sbr.rel (0) target = $region21
    $region20: #{tpu_custom_call.1} parent=1 // pred_region
      _
    $region21: #{tpu_custom_call.1} parent=1 // pred_fallthru
      _
    // Predicated region
    $region22: #{tpu_custom_call.1} parent=1 // pred_check
      _
    $region23: #{tpu_custom_call.1} parent=1 // pred_check_branch
      %26 = sbr.rel (0) target = $region25
    $region24: #{tpu_custom_call.1} parent=1 // pred_region
      _
    $region25: #{tpu_custom_call.1} parent=1 // pred_fallthru
      _
    %v28 = vld [vmem:[%s0] sm:$0xf]
    %v29 = vld [vmem:[%s0 + $0x4] sm:$0xf]
    %v30 = vld [vmem:[%s0 + $0x8] sm:$0xf]
    %v31 = vld [vmem:[%s0 + $0xc] sm:$0xf]
    %v32 = vld [vmem:[%s0 + $0x10] sm:$0xf]
    %v33 = vld [vmem:[%s0 + $0x14] sm:$0xf]
    %v34 = vld [vmem:[%s0 + $0x18] sm:$0xf]
    %v35 = vld [vmem:[%s0 + $0x1c] sm:$0xf]
    %v36 = vld [vmem:[%s0 + $0x20] sm:$0xf]
    %v37 = vld [vmem:[%s0 + $0x24] sm:$0xf]
    %v38 = vld [vmem:[%s0 + $0x28] sm:$0xf]
    %v39 = vld [vmem:[%s0 + $0x2c] sm:$0xf]
    %v40 = vld [vmem:[%s0 + $0x30] sm:$0xf]
    %v41 = vld [vmem:[%s0 + $0x34] sm:$0xf]
    %v42 = vld [vmem:[%s0 + $0x38] sm:$0xf]
    %v43 = vld [vmem:[%s0 + $0x3c] sm:$0xf]
    %v44 = vld [vmem:[%s0 + $0x40] sm:$0xf]
    %v45 = vld [vmem:[%s0 + $0x44] sm:$0xf]
    %v46 = vld [vmem:[%s0 + $0x48] sm:$0xf]
    %v47 = vld [vmem:[%s0 + $0x4c] sm:$0xf]
    %v48 = vld [vmem:[%s0 + $0x50] sm:$0xf]
    %v49 = vld [vmem:[%s0 + $0x54] sm:$0xf]
    %v50 = vld [vmem:[%s0 + $0x58] sm:$0xf]
    %v51 = vld [vmem:[%s0 + $0x5c] sm:$0xf]
    %v52 = vld [vmem:[%s0 + $0x60] sm:$0xf]
    %v53 = vld [vmem:[%s0 + $0x64] sm:$0xf]
    %v54 = vld [vmem:[%s0 + $0x68] sm:$0xf]
    %v55 = vld [vmem:[%s0 + $0x6c] sm:$0xf]
    %v56 = vld [vmem:[%s0 + $0x70] sm:$0xf]
    %v57 = vld [vmem:[%s0 + $0x74] sm:$0xf]
    %v58 = vld [vmem:[%s0 + $0x78] sm:$0xf]
    %v59 = vld [vmem:[%s0 + $0x7c] sm:$0xf]
    %v60 = vld [vmem:[%s0 + $0x80] sm:$0xf]
    %v61 = vld [vmem:[%s0 + $0x84] sm:$0xf]
    %v62 = vld [vmem:[%s0 + $0x88] sm:$0xf]
    %v63 = vld [vmem:[%s0 + $0x8c] sm:$0xf]
    %v64 = vld [vmem:[%s0 + $0x90] sm:$0xf]
    %v65 = vld [vmem:[%s0 + $0x94] sm:$0xf]
    %v66 = vld [vmem:[%s0 + $0x98] sm:$0xf]
    %v67 = vld [vmem:[%s0 + $0x9c] sm:$0xf]
    %v68 = vld [vmem:[%s0 + $0xa0] sm:$0xf]
    %v69 = vld [vmem:[%s0 + $0xa4] sm:$0xf]
    %v70 = vld [vmem:[%s0 + $0xa8] sm:$0xf]
    %v71 = vld [vmem:[%s0 + $0xac] sm:$0xf]
    %v72 = vld [vmem:[%s0 + $0xb0] sm:$0xf]
    %v73 = vld [vmem:[%s0 + $0xb4] sm:$0xf]
    %v74 = vld [vmem:[%s0 + $0xb8] sm:$0xf]
    %v75 = vld [vmem:[%s0 + $0xbc] sm:$0xf]
    %v76 = vld [vmem:[%s0 + $0xc0] sm:$0xf]
    %v77 = vld [vmem:[%s0 + $0xc4] sm:$0xf]
    %v78 = vld [vmem:[%s0 + $0xc8] sm:$0xf]
    %v79 = vld [vmem:[%s0 + $0xcc] sm:$0xf]
    %v80 = vld [vmem:[%s0 + $0xd0] sm:$0xf]
    %v81 = vld [vmem:[%s0 + $0xd4] sm:$0xf]
    %v82 = vld [vmem:[%s0 + $0xd8] sm:$0xf]
    %v83 = vld [vmem:[%s0 + $0xdc] sm:$0xf]
    %v84 = vld [vmem:[%s0 + $0xe0] sm:$0xf]
    %v85 = vld [vmem:[%s0 + $0xe4] sm:$0xf]
    %v86 = vld [vmem:[%s0 + $0xe8] sm:$0xf]
    %v87 = vld [vmem:[%s0 + $0xec] sm:$0xf]
    %v88 = vld [vmem:[%s0 + $0xf0] sm:$0xf]
    %v89 = vld [vmem:[%s0 + $0xf4] sm:$0xf]
    %v90 = vld [vmem:[%s0 + $0xf8] sm:$0xf]
    %v91 = vld [vmem:[%s0 + $0xfc] sm:$0xf]
    %v92 = vld [vmem:[%s1] sm:$0xf]
    %v93 = vld [vmem:[%s1 + $0x4] sm:$0xf]
    %v94 = vld [vmem:[%s1 + $0x8] sm:$0xf]
    %v95 = vld [vmem:[%s1 + $0xc] sm:$0xf]
    %v96 = vld [vmem:[%s1 + $0x10] sm:$0x3]
    %v97 = vld [vmem:[%s2] sm:$0x1]
    %v99 = vlaneseq
    %v100 = vshrl.u32 %v99, 7
    %v101 = vsub.s32 0, %v100
    %v102 = vrot.slane %v97, %v101
    %v168 = vunpack.c.l.b16 %v28
    %v169 = vunpack.c.l.b16 %v29
    %v170 = vunpack.c.l.b16 %v30
    %v171 = vunpack.c.l.b16 %v31
    %v172 = vunpack.c.l.b16 %v32
    %v173 = vunpack.c.l.b16 %v33
    %v174 = vunpack.c.l.b16 %v34
    %v175 = vunpack.c.l.b16 %v35
    %v176 = vunpack.c.l.b16 %v36
    %v177 = vunpack.c.l.b16 %v37
    %v178 = vunpack.c.l.b16 %v38
    %v179 = vunpack.c.l.b16 %v39
    %v180 = vunpack.c.l.b16 %v40
    %v181 = vunpack.c.l.b16 %v41
    %v182 = vunpack.c.l.b16 %v42
    %v183 = vunpack.c.l.b16 %v43
    %v184 = vunpack.c.l.b16 %v44
    %v185 = vunpack.c.l.b16 %v45
    %v186 = vunpack.c.l.b16 %v46
    %v187 = vunpack.c.l.b16 %v47
    %v188 = vunpack.c.l.b16 %v48
    %v189 = vunpack.c.l.b16 %v49
    %v190 = vunpack.c.l.b16 %v50
    %v191 = vunpack.c.l.b16 %v51
    %v192 = vunpack.c.l.b16 %v52
    %v193 = vunpack.c.l.b16 %v53
    %v194 = vunpack.c.l.b16 %v54
    %v195 = vunpack.c.l.b16 %v55
    %v196 = vunpack.c.l.b16 %v56
    %v197 = vunpack.c.l.b16 %v57
    %v198 = vunpack.c.l.b16 %v58
    %v199 = vunpack.c.l.b16 %v59
    %v200 = vunpack.c.l.b16 %v60
    %v201 = vunpack.c.l.b16 %v61
    %v202 = vunpack.c.l.b16 %v62
    %v203 = vunpack.c.l.b16 %v63
    %v204 = vunpack.c.l.b16 %v64
    %v205 = vunpack.c.l.b16 %v65
    %v206 = vunpack.c.l.b16 %v66
    %v207 = vunpack.c.l.b16 %v67
    %v208 = vunpack.c.l.b16 %v68
    %v209 = vunpack.c.l.b16 %v69
    %v210 = vunpack.c.l.b16 %v70
    %v211 = vunpack.c.l.b16 %v71
    %v212 = vunpack.c.l.b16 %v72
    %v213 = vunpack.c.l.b16 %v73
    %v214 = vunpack.c.l.b16 %v74
    %v215 = vunpack.c.l.b16 %v75
    %v216 = vunpack.c.l.b16 %v76
    %v217 = vunpack.c.l.b16 %v77
    %v218 = vunpack.c.l.b16 %v78
    %v219 = vunpack.c.l.b16 %v79
    %v220 = vunpack.c.l.b16 %v80
    %v221 = vunpack.c.l.b16 %v81
    %v222 = vunpack.c.l.b16 %v82
    %v223 = vunpack.c.l.b16 %v83
    %v224 = vunpack.c.l.b16 %v84
    %v225 = vunpack.c.l.b16 %v85
    %v226 = vunpack.c.l.b16 %v86
    %v227 = vunpack.c.l.b16 %v87
    %v228 = vunpack.c.l.b16 %v88
    %v229 = vunpack.c.l.b16 %v89
    %v230 = vunpack.c.l.b16 %v90
    %v231 = vunpack.c.l.b16 %v91
    %v232 = vpack.c.b16 %v169, %v168
    %v233 = vpack.c.b16 %v171, %v170
    %v234 = vpack.c.b16 %v173, %v172
    %v235 = vpack.c.b16 %v175, %v174
    %v236 = vpack.c.b16 %v177, %v176
    %v237 = vpack.c.b16 %v179, %v178
    %v238 = vpack.c.b16 %v181, %v180
    %v239 = vpack.c.b16 %v183, %v182
    %v240 = vpack.c.b16 %v185, %v184
    %v241 = vpack.c.b16 %v187, %v186
    %v242 = vpack.c.b16 %v189, %v188
    %v243 = vpack.c.b16 %v191, %v190
    %v244 = vpack.c.b16 %v193, %v192
    %v245 = vpack.c.b16 %v195, %v194
    %v246 = vpack.c.b16 %v197, %v196
    %v247 = vpack.c.b16 %v199, %v198
    %v248 = vpack.c.b16 %v201, %v200
    %v249 = vpack.c.b16 %v203, %v202
    %v250 = vpack.c.b16 %v205, %v204
    %v251 = vpack.c.b16 %v207, %v206
    %v252 = vpack.c.b16 %v209, %v208
    %v253 = vpack.c.b16 %v211, %v210
    %v254 = vpack.c.b16 %v213, %v212
    %v255 = vpack.c.b16 %v215, %v214
    %v256 = vpack.c.b16 %v217, %v216
    %v257 = vpack.c.b16 %v219, %v218
    %v258 = vpack.c.b16 %v221, %v220
    %v259 = vpack.c.b16 %v223, %v222
    %v260 = vpack.c.b16 %v225, %v224
    %v261 = vpack.c.b16 %v227, %v226
    %v262 = vpack.c.b16 %v229, %v228
    %v263 = vpack.c.b16 %v231, %v230
    %v269 = vunpack.c.l.b16 %v92
    %v270 = vunpack.c.l.b16 %v93
    %v271 = vunpack.c.l.b16 %v94
    %v272 = vunpack.c.l.b16 %v95
    %v273 = vunpack.c.l.b16 %v96
    %v274 = vpack.c.b16 %v270, %v269
    %v275 = vpack.c.b16 %v272, %v271
    %v276 = vpack.c.b16 %v273, %v273
    %vm279 = vcmask 293888
    %v281 = vsel %vm279, %v232, 0
    %v284 = vsel %vm279, %v233, 0
    %v287 = vsel %vm279, %v234, 0
    %v290 = vsel %vm279, %v235, 0
    %v293 = vsel %vm279, %v236, 0
    %v296 = vsel %vm279, %v237, 0
    %v299 = vsel %vm279, %v238, 0
    %v302 = vsel %vm279, %v239, 0
    %v305 = vsel %vm279, %v240, 0
    %v308 = vsel %vm279, %v241, 0
    %v311 = vsel %vm279, %v242, 0
    %v314 = vsel %vm279, %v243, 0
    %v317 = vsel %vm279, %v244, 0
    %v320 = vsel %vm279, %v245, 0
    %v323 = vsel %vm279, %v246, 0
    %v326 = vsel %vm279, %v247, 0
    %v329 = vsel %vm279, %v248, 0
    %v332 = vsel %vm279, %v249, 0
    %v335 = vsel %vm279, %v250, 0
    %v338 = vsel %vm279, %v251, 0
    %v341 = vsel %vm279, %v252, 0
    %v344 = vsel %vm279, %v253, 0
    %v347 = vsel %vm279, %v254, 0
    %v350 = vsel %vm279, %v255, 0
    %v353 = vsel %vm279, %v256, 0
    %v356 = vsel %vm279, %v257, 0
    %v359 = vsel %vm279, %v258, 0
    %v362 = vsel %vm279, %v259, 0
    %v365 = vsel %vm279, %v260, 0
    %v368 = vsel %vm279, %v261, 0
    %v371 = vsel %vm279, %v262, 0
    %v374 = vsel %vm279, %v263, 0
    %vm376 = vcmask 1041408
    %v378 = vsel %vm376, %v276, 0
    %380 = vmatprep.subr.bf16.mxu0 0
    %381 = vmatpush1.bf16.msra.mxu0 0
    %382 = vmatprep.subr.bf16.mxu0 0
    %383 = vmatpush1.bf16.msra.mxu0 0
    %384 = vmatprep.subr.bf16.mxu0 0
    %385 = vmatpush1.bf16.msra.mxu0 0
    %386 = vmatprep.subr.bf16.mxu0 0
    %387 = vmatpush1.bf16.msra.mxu0 0
    %388 = vmatprep.subr.bf16.mxu0 0
    %389 = vmatpush1.bf16.msra.mxu0 0
    %390 = vmatprep.subr.bf16.mxu0 0
    %391 = vmatpush1.bf16.msra.mxu0 %v378
    %392 = vmatprep.subr.bf16.mxu0 0
    %393 = vmatpush1.bf16.msra.mxu0 %v275
    %394 = vmatprep.subr.bf16.mxu0 0
    %395 = vmatpush1.bf16.msra.mxu0 %v274
    %396 = vmatprep.subr.bf16.mxu0 0
    %397 = vmatpush2.bf16.msra.mxu0 0
    %398 = vmatprep.subr.bf16.mxu0 0
    %399 = vmatpush2.bf16.msra.mxu0 0
    %400 = vmatprep.subr.bf16.mxu0 0
    %401 = vmatpush2.bf16.msra.mxu0 0
    %402 = vmatprep.subr.bf16.mxu0 0
    %403 = vmatpush2.bf16.msra.mxu0 0
    %404 = vmatprep.subr.bf16.mxu0 0
    %405 = vmatpush2.bf16.msra.mxu0 0
    %406 = vmatprep.subr.bf16.mxu0 0
    %407 = vmatpush2.bf16.msra.mxu0 0
    %408 = vmatprep.subr.bf16.mxu0 0
    %409 = vmatpush2.bf16.msra.mxu0 0
    %410 = vmatprep.subr.bf16.mxu0 0
    %411 = vmatpush2.bf16.msra.mxu0 0
    %412 = vmatprep.mubr.bf16.mxu0 0
    %413 = vmatmul.mubr.bf16.gmra.mxu0 %v281
    %v414 = vpop.f32.mrf.mxu0
    %v415 = vadd.f32 %v102, %v414
    %v416 = vpop.f32.mrf.mxu0
    %v417 = vpop.f32.mrf.mxu0
    %v418 = vadd.f32 %v102, %v417
    %v419 = vpop.f32.mrf.mxu0
    %420 = vmatprep.mubr.bf16.mxu0 0
    %421 = vmatmul.mubr.bf16.gmra.mxu0 %v284
    %v422 = vpop.f32.mrf.mxu0
    %v423 = vadd.f32 %v102, %v422
    %v424 = vpop.f32.mrf.mxu0
    %v425 = vpop.f32.mrf.mxu0
    %v426 = vadd.f32 %v102, %v425
    %v427 = vpop.f32.mrf.mxu0
    %428 = vmatprep.mubr.bf16.mxu0 0
    %429 = vmatmul.mubr.bf16.gmra.mxu0 %v287
    %v430 = vpop.f32.mrf.mxu0
    %v431 = vadd.f32 %v102, %v430
    %v432 = vpop.f32.mrf.mxu0
    %v433 = vpop.f32.mrf.mxu0
    %v434 = vadd.f32 %v102, %v433
    %v435 = vpop.f32.mrf.mxu0
    %436 = vmatprep.mubr.bf16.mxu0 0
    %437 = vmatmul.mubr.bf16.gmra.mxu0 %v290
    %v438 = vpop.f32.mrf.mxu0
    %v439 = vadd.f32 %v102, %v438
    %v440 = vpop.f32.mrf.mxu0
    %v441 = vpop.f32.mrf.mxu0
    %v442 = vadd.f32 %v102, %v441
    %v443 = vpop.f32.mrf.mxu0
    %444 = vmatprep.mubr.bf16.mxu0 0
    %445 = vmatmul.mubr.bf16.gmra.mxu0 %v293
    %v446 = vpop.f32.mrf.mxu0
    %v447 = vadd.f32 %v102, %v446
    %v448 = vpop.f32.mrf.mxu0
    %v449 = vpop.f32.mrf.mxu0
    %v450 = vadd.f32 %v102, %v449
    %v451 = vpop.f32.mrf.mxu0
    %452 = vmatprep.mubr.bf16.mxu0 0
    %453 = vmatmul.mubr.bf16.gmra.mxu0 %v296
    %v454 = vpop.f32.mrf.mxu0
    %v455 = vadd.f32 %v102, %v454
    %v456 = vpop.f32.mrf.mxu0
    %v457 = vpop.f32.mrf.mxu0
    %v458 = vadd.f32 %v102, %v457
    %v459 = vpop.f32.mrf.mxu0
    %460 = vmatprep.mubr.bf16.mxu0 0
    %461 = vmatmul.mubr.bf16.gmra.mxu0 %v299
    %v462 = vpop.f32.mrf.mxu0
    %v463 = vadd.f32 %v102, %v462
    %v464 = vpop.f32.mrf.mxu0
    %v465 = vpop.f32.mrf.mxu0
    %v466 = vadd.f32 %v102, %v465
    %v467 = vpop.f32.mrf.mxu0
    %468 = vmatprep.mubr.bf16.mxu0 0
    %469 = vmatmul.mubr.bf16.gmra.mxu0 %v302
    %v470 = vpop.f32.mrf.mxu0
    %v471 = vadd.f32 %v102, %v470
    %v472 = vpop.f32.mrf.mxu0
    %v473 = vpop.f32.mrf.mxu0
    %v474 = vadd.f32 %v102, %v473
    %v475 = vpop.f32.mrf.mxu0
    %476 = vmatprep.mubr.bf16.mxu0 0
    %477 = vmatmul.mubr.bf16.gmra.mxu0 %v305
    %v478 = vpop.f32.mrf.mxu0
    %v479 = vadd.f32 %v102, %v478
    %v480 = vpop.f32.mrf.mxu0
    %v481 = vpop.f32.mrf.mxu0
    %v482 = vadd.f32 %v102, %v481
    %v483 = vpop.f32.mrf.mxu0
    %484 = vmatprep.mubr.bf16.mxu0 0
    %485 = vmatmul.mubr.bf16.gmra.mxu0 %v308
    %v486 = vpop.f32.mrf.mxu0
    %v487 = vadd.f32 %v102, %v486
    %v488 = vpop.f32.mrf.mxu0
    %v489 = vpop.f32.mrf.mxu0
    %v490 = vadd.f32 %v102, %v489
    %v491 = vpop.f32.mrf.mxu0
    %492 = vmatprep.mubr.bf16.mxu0 0
    %493 = vmatmul.mubr.bf16.gmra.mxu0 %v311
    %v494 = vpop.f32.mrf.mxu0
    %v495 = vadd.f32 %v102, %v494
    %v496 = vpop.f32.mrf.mxu0
    %v497 = vpop.f32.mrf.mxu0
    %v498 = vadd.f32 %v102, %v497
    %v499 = vpop.f32.mrf.mxu0
    %500 = vmatprep.mubr.bf16.mxu0 0
    %501 = vmatmul.mubr.bf16.gmra.mxu0 %v314
    %v502 = vpop.f32.mrf.mxu0
    %v503 = vadd.f32 %v102, %v502
    %v504 = vpop.f32.mrf.mxu0
    %v505 = vpop.f32.mrf.mxu0
    %v506 = vadd.f32 %v102, %v505
    %v507 = vpop.f32.mrf.mxu0
    %508 = vmatprep.mubr.bf16.mxu0 0
    %509 = vmatmul.mubr.bf16.gmra.mxu0 %v317
    %v510 = vpop.f32.mrf.mxu0
    %v511 = vadd.f32 %v102, %v510
    %v512 = vpop.f32.mrf.mxu0
    %v513 = vpop.f32.mrf.mxu0
    %v514 = vadd.f32 %v102, %v513
    %v515 = vpop.f32.mrf.mxu0
    %516 = vmatprep.mubr.bf16.mxu0 0
    %517 = vmatmul.mubr.bf16.gmra.mxu0 %v320
    %v518 = vpop.f32.mrf.mxu0
    %v519 = vadd.f32 %v102, %v518
    %v520 = vpop.f32.mrf.mxu0
    %v521 = vpop.f32.mrf.mxu0
    %v522 = vadd.f32 %v102, %v521
    %v523 = vpop.f32.mrf.mxu0
    %524 = vmatprep.mubr.bf16.mxu0 0
    %525 = vmatmul.mubr.bf16.gmra.mxu0 %v323
    %v526 = vpop.f32.mrf.mxu0
    %v527 = vadd.f32 %v102, %v526
    %v528 = vpop.f32.mrf.mxu0
    %v529 = vpop.f32.mrf.mxu0
    %v530 = vadd.f32 %v102, %v529
    %v531 = vpop.f32.mrf.mxu0
    %532 = vmatprep.mubr.bf16.mxu0 0
    %533 = vmatmul.mubr.bf16.gmra.mxu0 %v326
    %v534 = vpop.f32.mrf.mxu0
    %v535 = vadd.f32 %v102, %v534
    %v536 = vpop.f32.mrf.mxu0
    %v537 = vpop.f32.mrf.mxu0
    %v538 = vadd.f32 %v102, %v537
    %v539 = vpop.f32.mrf.mxu0
    %540 = vmatprep.mubr.bf16.mxu0 0
    %541 = vmatmul.mubr.bf16.gmra.mxu0 %v329
    %v542 = vpop.f32.mrf.mxu0
    %v543 = vadd.f32 %v102, %v542
    %v544 = vpop.f32.mrf.mxu0
    %v545 = vpop.f32.mrf.mxu0
    %v546 = vadd.f32 %v102, %v545
    %v547 = vpop.f32.mrf.mxu0
    %548 = vmatprep.mubr.bf16.mxu0 0
    %549 = vmatmul.mubr.bf16.gmra.mxu0 %v332
    %v550 = vpop.f32.mrf.mxu0
    %v551 = vadd.f32 %v102, %v550
    %v552 = vpop.f32.mrf.mxu0
    %v553 = vpop.f32.mrf.mxu0
    %v554 = vadd.f32 %v102, %v553
    %v555 = vpop.f32.mrf.mxu0
    %556 = vmatprep.mubr.bf16.mxu0 0
    %557 = vmatmul.mubr.bf16.gmra.mxu0 %v335
    %v558 = vpop.f32.mrf.mxu0
    %v559 = vadd.f32 %v102, %v558
    %v560 = vpop.f32.mrf.mxu0
    %v561 = vpop.f32.mrf.mxu0
    %v562 = vadd.f32 %v102, %v561
    %v563 = vpop.f32.mrf.mxu0
    %564 = vmatprep.mubr.bf16.mxu0 0
    %565 = vmatmul.mubr.bf16.gmra.mxu0 %v338
    %v566 = vpop.f32.mrf.mxu0
    %v567 = vadd.f32 %v102, %v566
    %v568 = vpop.f32.mrf.mxu0
    %v569 = vpop.f32.mrf.mxu0
    %v570 = vadd.f32 %v102, %v569
    %v571 = vpop.f32.mrf.mxu0
    %572 = vmatprep.mubr.bf16.mxu0 0
    %573 = vmatmul.mubr.bf16.gmra.mxu0 %v341
    %v574 = vpop.f32.mrf.mxu0
    %v575 = vadd.f32 %v102, %v574
    %v576 = vpop.f32.mrf.mxu0
    %v577 = vpop.f32.mrf.mxu0
    %v578 = vadd.f32 %v102, %v577
    %v579 = vpop.f32.mrf.mxu0
    %580 = vmatprep.mubr.bf16.mxu0 0
    %581 = vmatmul.mubr.bf16.gmra.mxu0 %v344
    %v582 = vpop.f32.mrf.mxu0
    %v583 = vadd.f32 %v102, %v582
    %v584 = vpop.f32.mrf.mxu0
    %v585 = vpop.f32.mrf.mxu0
    %v586 = vadd.f32 %v102, %v585
    %v587 = vpop.f32.mrf.mxu0
    %588 = vmatprep.mubr.bf16.mxu0 0
    %589 = vmatmul.mubr.bf16.gmra.mxu0 %v347
    %v590 = vpop.f32.mrf.mxu0
    %v591 = vadd.f32 %v102, %v590
    %v592 = vpop.f32.mrf.mxu0
    %v593 = vpop.f32.mrf.mxu0
    %v594 = vadd.f32 %v102, %v593
    %v595 = vpop.f32.mrf.mxu0
    %596 = vmatprep.mubr.bf16.mxu0 0
    %597 = vmatmul.mubr.bf16.gmra.mxu0 %v350
    %v598 = vpop.f32.mrf.mxu0
    %v599 = vadd.f32 %v102, %v598
    %v600 = vpop.f32.mrf.mxu0
    %v601 = vpop.f32.mrf.mxu0
    %v602 = vadd.f32 %v102, %v601
    %v603 = vpop.f32.mrf.mxu0
    %604 = vmatprep.mubr.bf16.mxu0 0
    %605 = vmatmul.mubr.bf16.gmra.mxu0 %v353
    %v606 = vpop.f32.mrf.mxu0
    %v607 = vadd.f32 %v102, %v606
    %v608 = vpop.f32.mrf.mxu0
    %v609 = vpop.f32.mrf.mxu0
    %v610 = vadd.f32 %v102, %v609
    %v611 = vpop.f32.mrf.mxu0
    %612 = vmatprep.mubr.bf16.mxu0 0
    %613 = vmatmul.mubr.bf16.gmra.mxu0 %v356
    %v614 = vpop.f32.mrf.mxu0
    %v615 = vadd.f32 %v102, %v614
    %v616 = vpop.f32.mrf.mxu0
    %v617 = vpop.f32.mrf.mxu0
    %v618 = vadd.f32 %v102, %v617
    %v619 = vpop.f32.mrf.mxu0
    %620 = vmatprep.mubr.bf16.mxu0 0
    %621 = vmatmul.mubr.bf16.gmra.mxu0 %v359
    %v622 = vpop.f32.mrf.mxu0
    %v623 = vadd.f32 %v102, %v622
    %v624 = vpop.f32.mrf.mxu0
    %v625 = vpop.f32.mrf.mxu0
    %v626 = vadd.f32 %v102, %v625
    %v627 = vpop.f32.mrf.mxu0
    %628 = vmatprep.mubr.bf16.mxu0 0
    %629 = vmatmul.mubr.bf16.gmra.mxu0 %v362
    %v630 = vpop.f32.mrf.mxu0
    %v631 = vadd.f32 %v102, %v630
    %v632 = vpop.f32.mrf.mxu0
    %v633 = vpop.f32.mrf.mxu0
    %v634 = vadd.f32 %v102, %v633
    %v635 = vpop.f32.mrf.mxu0
    %636 = vmatprep.mubr.bf16.mxu0 0
    %637 = vmatmul.mubr.bf16.gmra.mxu0 %v365
    %v638 = vpop.f32.mrf.mxu0
    %v639 = vadd.f32 %v102, %v638
    %v640 = vpop.f32.mrf.mxu0
    %v641 = vpop.f32.mrf.mxu0
    %v642 = vadd.f32 %v102, %v641
    %v643 = vpop.f32.mrf.mxu0
    %644 = vmatprep.mubr.bf16.mxu0 0
    %645 = vmatmul.mubr.bf16.gmra.mxu0 %v368
    %v646 = vpop.f32.mrf.mxu0
    %v647 = vadd.f32 %v102, %v646
    %v648 = vpop.f32.mrf.mxu0
    %v649 = vpop.f32.mrf.mxu0
    %v650 = vadd.f32 %v102, %v649
    %v651 = vpop.f32.mrf.mxu0
    %652 = vmatprep.mubr.bf16.mxu0 0
    %653 = vmatmul.mubr.bf16.gmra.mxu0 %v371
    %v654 = vpop.f32.mrf.mxu0
    %v655 = vadd.f32 %v102, %v654
    %v656 = vpop.f32.mrf.mxu0
    %v657 = vpop.f32.mrf.mxu0
    %v658 = vadd.f32 %v102, %v657
    %v659 = vpop.f32.mrf.mxu0
    %660 = vmatprep.mubr.bf16.mxu0 0
    %661 = vmatmul.mubr.bf16.gmra.mxu0 %v374
    %v662 = vpop.f32.mrf.mxu0
    %v663 = vadd.f32 %v102, %v662
    %v664 = vpop.f32.mrf.mxu0
    %v665 = vpop.f32.mrf.mxu0
    %v666 = vadd.f32 %v102, %v665
    %v667 = vpop.f32.mrf.mxu0
    %668 = vdwg.mxu0
    %v669 = vmax.f32 %v415, 0.0
    %v670 = vmax.f32 %v418, 0.0
    %v671 = vmax.f32 %v423, 0.0
    %v672 = vmax.f32 %v426, 0.0
    %v673 = vmax.f32 %v431, 0.0
    %v674 = vmax.f32 %v434, 0.0
    %v675 = vmax.f32 %v439, 0.0
    %v676 = vmax.f32 %v442, 0.0
    %v677 = vmax.f32 %v447, 0.0
    %v678 = vmax.f32 %v450, 0.0
    %v679 = vmax.f32 %v455, 0.0
    %v680 = vmax.f32 %v458, 0.0
    %v681 = vmax.f32 %v463, 0.0
    %v682 = vmax.f32 %v466, 0.0
    %v683 = vmax.f32 %v471, 0.0
    %v684 = vmax.f32 %v474, 0.0
    %v685 = vmax.f32 %v479, 0.0
    %v686 = vmax.f32 %v482, 0.0
    %v687 = vmax.f32 %v487, 0.0
    %v688 = vmax.f32 %v490, 0.0
    %v689 = vmax.f32 %v495, 0.0
    %v690 = vmax.f32 %v498, 0.0
    %v691 = vmax.f32 %v503, 0.0
    %v692 = vmax.f32 %v506, 0.0
    %v693 = vmax.f32 %v511, 0.0
    %v694 = vmax.f32 %v514, 0.0
    %v695 = vmax.f32 %v519, 0.0
    %v696 = vmax.f32 %v522, 0.0
    %v697 = vmax.f32 %v527, 0.0
    %v698 = vmax.f32 %v530, 0.0
    %v699 = vmax.f32 %v535, 0.0
    %v700 = vmax.f32 %v538, 0.0
    %v701 = vmax.f32 %v543, 0.0
    %v702 = vmax.f32 %v546, 0.0
    %v703 = vmax.f32 %v551, 0.0
    %v704 = vmax.f32 %v554, 0.0
    %v705 = vmax.f32 %v559, 0.0
    %v706 = vmax.f32 %v562, 0.0
    %v707 = vmax.f32 %v567, 0.0
    %v708 = vmax.f32 %v570, 0.0
    %v709 = vmax.f32 %v575, 0.0
    %v710 = vmax.f32 %v578, 0.0
    %v711 = vmax.f32 %v583, 0.0
    %v712 = vmax.f32 %v586, 0.0
    %v713 = vmax.f32 %v591, 0.0
    %v714 = vmax.f32 %v594, 0.0
    %v715 = vmax.f32 %v599, 0.0
    %v716 = vmax.f32 %v602, 0.0
    %v717 = vmax.f32 %v607, 0.0
    %v718 = vmax.f32 %v610, 0.0
    %v719 = vmax.f32 %v615, 0.0
    %v720 = vmax.f32 %v618, 0.0
    %v721 = vmax.f32 %v623, 0.0
    %v722 = vmax.f32 %v626, 0.0
    %v723 = vmax.f32 %v631, 0.0
    %v724 = vmax.f32 %v634, 0.0
    %v725 = vmax.f32 %v639, 0.0
    %v726 = vmax.f32 %v642, 0.0
    %v727 = vmax.f32 %v647, 0.0
    %v728 = vmax.f32 %v650, 0.0
    %v729 = vmax.f32 %v655, 0.0
    %v730 = vmax.f32 %v658, 0.0
    %v731 = vmax.f32 %v663, 0.0
    %v732 = vmax.f32 %v666, 0.0
    %v733 = vld [vmem:[%s3] sm:$0xf]
    %v734 = vpack.c.bf16 %v670, %v669
    %v735 = vpack.c.bf16 %v672, %v671
    %v736 = vpack.c.bf16 %v674, %v673
    %v737 = vpack.c.bf16 %v676, %v675
    %v738 = vpack.c.bf16 %v678, %v677
    %v739 = vpack.c.bf16 %v680, %v679
    %v740 = vpack.c.bf16 %v682, %v681
    %v741 = vpack.c.bf16 %v684, %v683
    %v742 = vpack.c.bf16 %v686, %v685
    %v743 = vpack.c.bf16 %v688, %v687
    %v744 = vpack.c.bf16 %v690, %v689
    %v745 = vpack.c.bf16 %v692, %v691
    %v746 = vpack.c.bf16 %v694, %v693
    %v747 = vpack.c.bf16 %v696, %v695
    %v748 = vpack.c.bf16 %v698, %v697
    %v749 = vpack.c.bf16 %v700, %v699
    %v750 = vpack.c.bf16 %v702, %v701
    %v751 = vpack.c.bf16 %v704, %v703
    %v752 = vpack.c.bf16 %v706, %v705
    %v753 = vpack.c.bf16 %v708, %v707
    %v754 = vpack.c.bf16 %v710, %v709
    %v755 = vpack.c.bf16 %v712, %v711
    %v756 = vpack.c.bf16 %v714, %v713
    %v757 = vpack.c.bf16 %v716, %v715
    %v758 = vpack.c.bf16 %v718, %v717
    %v759 = vpack.c.bf16 %v720, %v719
    %v760 = vpack.c.bf16 %v722, %v721
    %v761 = vpack.c.bf16 %v724, %v723
    %v762 = vpack.c.bf16 %v726, %v725
    %v763 = vpack.c.bf16 %v728, %v727
    %v764 = vpack.c.bf16 %v730, %v729
    %v765 = vpack.c.bf16 %v732, %v731
    %v768 = vunpack.c.l.s4 1966171168
    %v769 = vunpack.c.0.s8 %v768
    %v770 = vlaneseq
    %v771 = vshrl.u32 %v770, 7
    %v772 = vsub.s32 %v769, %v771
    %v773 = vrot.slane %v733, %v772
    %v774 = vcombine.high %v773, %v773
    %v776 = vunpack.c.l.s4 1966171168
    %v777 = vunpack.c.0.s8 %v776
    %v778 = vlaneseq
    %v779 = vshrl.u32 %v778, 7
    %v780 = vsub.s32 %v777, %v779
    %v781 = vrot.slane %v773, %v780
    %v783 = vunpack.c.l.s4 1966171168
    %v784 = vunpack.c.0.s8 %v783
    %v785 = vlaneseq
    %v786 = vshrl.u32 %v785, 7
    %v787 = vsub.s32 %v784, %v786
    %v788 = vrot.slane %v774, %v787
    %v789 = vcombine.high %v781, %v781
    %v790 = vcombine.high %v788, %v788
    %795 = vmatprep.subr.bf16.mxu0 0
    %796 = vmatpush1.bf16.msra.mxu0 %v741
    %797 = vmatprep.subr.bf16.mxu0 0
    %798 = vmatpush1.bf16.msra.mxu0 %v740
    %799 = vmatprep.subr.bf16.mxu0 0
    %800 = vmatpush1.bf16.msra.mxu0 %v739
    %801 = vmatprep.subr.bf16.mxu0 0
    %802 = vmatpush1.bf16.msra.mxu0 %v738
    %803 = vmatprep.subr.bf16.mxu0 0
    %804 = vmatpush1.bf16.msra.mxu0 %v737
    %805 = vmatprep.subr.bf16.mxu0 0
    %806 = vmatpush1.bf16.msra.mxu0 %v736
    %807 = vmatprep.subr.bf16.mxu0 0
    %808 = vmatpush1.bf16.msra.mxu0 %v735
    %809 = vmatprep.subr.bf16.mxu0 0
    %810 = vmatpush1.bf16.msra.mxu0 %v734
    %811 = vmatprep.subr.bf16.mxu0 0
    %812 = vmatpush2.bf16.msra.mxu0 %v749
    %813 = vmatprep.subr.bf16.mxu0 0
    %814 = vmatpush2.bf16.msra.mxu0 %v748
    %815 = vmatprep.subr.bf16.mxu0 0
    %816 = vmatpush2.bf16.msra.mxu0 %v747
    %817 = vmatprep.subr.bf16.mxu0 0
    %818 = vmatpush2.bf16.msra.mxu0 %v746
    %819 = vmatprep.subr.bf16.mxu0 0
    %820 = vmatpush2.bf16.msra.mxu0 %v745
    %821 = vmatprep.subr.bf16.mxu0 0
    %822 = vmatpush2.bf16.msra.mxu0 %v744
    %823 = vmatprep.subr.bf16.mxu0 0
    %824 = vmatpush2.bf16.msra.mxu0 %v743
    %825 = vmatprep.subr.bf16.mxu0 0
    %826 = vmatpush2.bf16.msra.mxu0 %v742
    %827 = vmatprep.mubr.bf16.mxu0 %v788
    %828 = vmatmul.mubr.bf16.gmra.mxu0 %v781
    %v829 = vpop.f32.mrf.mxu0
    %v830 = vadd.f32 0.0, %v829
    %v831 = vpop.f32.mrf.mxu0
    %v832 = vpop.f32.mrf.mxu0
    %v833 = vpop.f32.mrf.mxu0
    %834 = vdwg.mxu0
    %835 = vmatprep.subr.bf16.mxu0 0
    %836 = vmatpush1.bf16.msra.mxu0 %v757
    %837 = vmatprep.subr.bf16.mxu0 0
    %838 = vmatpush1.bf16.msra.mxu0 %v756
    %839 = vmatprep.subr.bf16.mxu0 0
    %840 = vmatpush1.bf16.msra.mxu0 %v755
    %841 = vmatprep.subr.bf16.mxu0 0
    %842 = vmatpush1.bf16.msra.mxu0 %v754
    %843 = vmatprep.subr.bf16.mxu0 0
    %844 = vmatpush1.bf16.msra.mxu0 %v753
    %845 = vmatprep.subr.bf16.mxu0 0
    %846 = vmatpush1.bf16.msra.mxu0 %v752
    %847 = vmatprep.subr.bf16.mxu0 0
    %848 = vmatpush1.bf16.msra.mxu0 %v751
    %849 = vmatprep.subr.bf16.mxu0 0
    %850 = vmatpush1.bf16.msra.mxu0 %v750
    %851 = vmatprep.subr.bf16.mxu0 0
    %852 = vmatpush2.bf16.msra.mxu0 %v765
    %853 = vmatprep.subr.bf16.mxu0 0
    %854 = vmatpush2.bf16.msra.mxu0 %v764
    %855 = vmatprep.subr.bf16.mxu0 0
    %856 = vmatpush2.bf16.msra.mxu0 %v763
    %857 = vmatprep.subr.bf16.mxu0 0
    %858 = vmatpush2.bf16.msra.mxu0 %v762
    %859 = vmatprep.subr.bf16.mxu0 0
    %860 = vmatpush2.bf16.msra.mxu0 %v761
    %861 = vmatprep.subr.bf16.mxu0 0
    %862 = vmatpush2.bf16.msra.mxu0 %v760
    %863 = vmatprep.subr.bf16.mxu0 0
    %864 = vmatpush2.bf16.msra.mxu0 %v759
    %865 = vmatprep.subr.bf16.mxu0 0
    %866 = vmatpush2.bf16.msra.mxu0 %v758
    %867 = vmatprep.mubr.bf16.mxu0 %v790
    %868 = vmatmul.mubr.bf16.gmra.mxu0 %v789
    %v869 = vpop.f32.mrf.mxu0
    %v870 = vadd.f32 %v830, %v869
    %v871 = vpop.f32.mrf.mxu0
    %v872 = vpop.f32.mrf.mxu0
    %v873 = vpop.f32.mrf.mxu0
    %874 = vdwg.mxu0
    %875 = vst [vmem:[#allocation2] sm:$0x3] %v870
    %v876 = vpack.c.bf16 %v870, %v870
    %v877 = vld [vmem:[%s4] sm:$0xf]
    %v878 = vld [vmem:[%s4 + $0x4] sm:$0xf]
    %v879 = vld [vmem:[%s4 + $0x8] sm:$0xf]
    %v880 = vld [vmem:[%s4 + $0xc] sm:$0xf]
    %v881 = vld [vmem:[%s4 + $0x10] sm:$0xf]
    %v882 = vld [vmem:[%s4 + $0x14] sm:$0xf]
    %v883 = vld [vmem:[%s4 + $0x18] sm:$0xf]
    %v884 = vld [vmem:[%s4 + $0x1c] sm:$0xf]
    %v885 = vld [vmem:[%s4 + $0x20] sm:$0xf]
    %v886 = vld [vmem:[%s4 + $0x24] sm:$0xf]
    %v887 = vld [vmem:[%s4 + $0x28] sm:$0xf]
    %v888 = vld [vmem:[%s4 + $0x2c] sm:$0xf]
    %v889 = vld [vmem:[%s4 + $0x30] sm:$0xf]
    %v890 = vld [vmem:[%s4 + $0x34] sm:$0xf]
    %v891 = vld [vmem:[%s4 + $0x38] sm:$0xf]
    %v892 = vld [vmem:[%s4 + $0x3c] sm:$0xf]
    %v893 = vld [vmem:[%s5] sm:$0x1]
    %v895 = vlaneseq
    %v896 = vshrl.u32 %v895, 7
    %v897 = vsub.s32 0, %v896
    %v898 = vrot.slane %v893, %v897
    %v916 = vunpack.c.l.b16 %v877
    %v917 = vunpack.c.l.b16 %v878
    %v918 = vunpack.c.l.b16 %v879
    %v919 = vunpack.c.l.b16 %v880
    %v920 = vunpack.c.l.b16 %v881
    %v921 = vunpack.c.l.b16 %v882
    %v922 = vunpack.c.l.b16 %v883
    %v923 = vunpack.c.l.b16 %v884
    %v924 = vunpack.c.l.b16 %v885
    %v925 = vunpack.c.l.b16 %v886
    %v926 = vunpack.c.l.b16 %v887
    %v927 = vunpack.c.l.b16 %v888
    %v928 = vunpack.c.l.b16 %v889
    %v929 = vunpack.c.l.b16 %v890
    %v930 = vunpack.c.l.b16 %v891
    %v931 = vunpack.c.l.b16 %v892
    %v932 = vpack.c.b16 %v917, %v916
    %v933 = vpack.c.b16 %v919, %v918
    %v934 = vpack.c.b16 %v921, %v920
    %v935 = vpack.c.b16 %v923, %v922
    %v936 = vpack.c.b16 %v925, %v924
    %v937 = vpack.c.b16 %v927, %v926
    %v938 = vpack.c.b16 %v929, %v928
    %v939 = vpack.c.b16 %v931, %v930
    %948 = vmatprep.subr.bf16.mxu0 0
    %949 = vmatpush1.bf16.msra.mxu0 %v939
    %950 = vmatprep.subr.bf16.mxu0 0
    %951 = vmatpush1.bf16.msra.mxu0 %v938
    %952 = vmatprep.subr.bf16.mxu0 0
    %953 = vmatpush1.bf16.msra.mxu0 %v937
    %954 = vmatprep.subr.bf16.mxu0 0
    %955 = vmatpush1.bf16.msra.mxu0 %v936
    %956 = vmatprep.subr.bf16.mxu0 0
    %957 = vmatpush1.bf16.msra.mxu0 %v935
    %958 = vmatprep.subr.bf16.mxu0 0
    %959 = vmatpush1.bf16.msra.mxu0 %v934
    %960 = vmatprep.subr.bf16.mxu0 0
    %961 = vmatpush1.bf16.msra.mxu0 %v933
    %962 = vmatprep.subr.bf16.mxu0 0
    %963 = vmatpush1.bf16.msra.mxu0 %v932
    %964 = vmatprep.subr.bf16.mxu0 0
    %965 = vmatpush2.bf16.msra.mxu0 0
    %966 = vmatprep.subr.bf16.mxu0 0
    %967 = vmatpush2.bf16.msra.mxu0 0
    %968 = vmatprep.subr.bf16.mxu0 0
    %969 = vmatpush2.bf16.msra.mxu0 0
    %970 = vmatprep.subr.bf16.mxu0 0
    %971 = vmatpush2.bf16.msra.mxu0 0
    %972 = vmatprep.subr.bf16.mxu0 0
    %973 = vmatpush2.bf16.msra.mxu0 0
    %974 = vmatprep.subr.bf16.mxu0 0
    %975 = vmatpush2.bf16.msra.mxu0 0
    %976 = vmatprep.subr.bf16.mxu0 0
    %977 = vmatpush2.bf16.msra.mxu0 0
    %978 = vmatprep.subr.bf16.mxu0 0
    %979 = vmatpush2.bf16.msra.mxu0 0
    %980 = vmatprep.mubr.bf16.mxu0 0
    %981 = vmatmul.mubr.bf16.gmra.mxu0 %v876
    %v982 = vpop.f32.mrf.mxu0
    %v983 = vadd.f32 %v898, %v982
    %v984 = vpop.f32.mrf.mxu0
    %v985 = vpop.f32.mrf.mxu0
    %v986 = vpop.f32.mrf.mxu0
    %987 = vdwg.mxu0
    %988 = vst [vmem:[#allocation4] sm:$0x3] %v983
    // Predicated region
    $region26: #{tpu_custom_call.1} parent=1 // pred_check
      _
    $region27: #{tpu_custom_call.1} parent=1 // pred_check_branch
      %990 = sbr.rel (0) target = $region29
    $region28: #{tpu_custom_call.1} parent=1 // pred_region
      %s992 = ssub.s32 32, 32
      %993 = vsyncadd [#allocation3], %s992
      %s995 = sshll.u32 [#allocation2], 4
      %s996 = int_to_ptr.vmem [resolvable:$true] %s995
      %998 = dma.vmem_to_hbm [thread:$0]  %s996, 32, %s6, [#allocation3]
    $region29: #{tpu_custom_call.1} parent=1 // pred_fallthru
      _
    // Predicated region
    $region30: #{tpu_custom_call.1} parent=1 // pred_check
      _
    $region31: #{tpu_custom_call.1} parent=1 // pred_check_branch
      %1000 = sbr.rel (0) target = $region33
    $region32: #{tpu_custom_call.1} parent=1 // pred_region
      %s1002 = ssub.s32 32, 32
      %1003 = vsyncadd [#allocation5], %s1002
      %s1005 = sshll.u32 [#allocation4], 4
      %s1006 = int_to_ptr.vmem [resolvable:$true] %s1005
      %1008 = dma.vmem_to_hbm [thread:$0]  %s1006, 32, %s7, [#allocation5]
    $region33: #{tpu_custom_call.1} parent=1 // pred_fallthru
      _
    // Predicated region
    $region34: #{tpu_custom_call.1} parent=1 // pred_check
      _
    $region35: #{tpu_custom_call.1} parent=1 // pred_check_branch
      %1010 = sbr.rel (0) target = $region37
    $region36: #{tpu_custom_call.1} parent=1 // pred_region
      %1011 = dma.done [#allocation3], 32
    $region37: #{tpu_custom_call.1} parent=1 // pred_fallthru
      _
    // Predicated region
    $region38: #{tpu_custom_call.1} parent=1 // pred_check
      _
    $region39: #{tpu_custom_call.1} parent=1 // pred_check_branch
      %1013 = sbr.rel (0) target = $region41
    $region40: #{tpu_custom_call.1} parent=1 // pred_region
      %1014 = dma.done [#allocation5], 32
    $region41: #{tpu_custom_call.1} parent=1 // pred_fallthru
      _
    %1015 = vsyncpa [#allocation3], 1
    %1016 = vsyncpa [#allocation5], 1

</llo_original>
